<compile_context>
chip_gen: v7x
topology: tpu7x:2x2x1
jax: 0.10.0
libtpu: 0.0.40
codegen_flags: <defaults>
</compile_context>

<pallas_src>
import math

import jax
import jax.numpy as jnp
from jax.experimental import pallas as pl
from jax.experimental.pallas import tpu as pltpu

FEATURE_DIM = 128     # queue is registered as randn(128, K) in the module
NN_NUM = 5
T1 = 0.07
T2 = 0.07
MOMENTUM = 0.999
_NEG_BIG = -1e30
_VMEM_LIMIT = 32 * 1024 * 1024


def _round_up(x, m):
    return ((x + m - 1) // m) * m


# ----------------------------------------------------------------------------
# Encoder kernel: x @ W0 + b0 -> (@W1 + b1) -> ReLU -> (@W2 + b2)
# (MoCo mlp head: Linear(dim_mlp, dim_mlp), ReLU, Linear(dim_mlp, feature_dim))
# TODO(synk): the real base_encoder (ST-GCN loaded via import_class) is not
# available here; it is replaced by a deterministic Linear backbone.
# ----------------------------------------------------------------------------
def _encoder_kernel(x_ref, w0_ref, b0_ref, w1_ref, b1_ref, w2_ref, b2_ref, out_ref):
    # bf16 matmul inputs with f32 accumulation; elementwise math stays f32.
    h = jnp.dot(x_ref[...], w0_ref[...], preferred_element_type=jnp.float32) + b0_ref[...]
    h = jnp.dot(h.astype(jnp.bfloat16), w1_ref[...],
                preferred_element_type=jnp.float32) + b1_ref[...]
    h = jnp.maximum(h, 0.0)
    out_ref[...] = jnp.dot(h.astype(jnp.bfloat16), w2_ref[...],
                           preferred_element_type=jnp.float32) + b2_ref[...]


def encoder_forward(x_flat, params, *, block_n=128):
    w0, b0, w1, b1, w2, b2 = (params[k] for k in ("w0", "b0", "w1", "b1", "w2", "b2"))
    n, f = x_flat.shape
    hd = w0.shape[1]
    d = w2.shape[1]

    # Zero-pad the hidden (mlp) dim up to a lane-dense multiple of 128 so every
    # intermediate and store is unmasked and the MXU N-dim is filled.  Padding
    # with zeros is exact through Linear -> ReLU -> Linear.
    hdp = _round_up(hd, 128)
    if hdp != hd:
        p = hdp - hd
        w0 = jnp.pad(w0, ((0, 0), (0, p)))
        b0 = jnp.pad(b0, ((0, 0), (0, p)))
        w1 = jnp.pad(w1, ((0, p), (0, p)))
        b1 = jnp.pad(b1, ((0, 0), (0, p)))
        w2 = jnp.pad(w2, ((0, p), (0, 0)))

    x16 = x_flat.astype(jnp.bfloat16)
    w0, w1, w2 = (w.astype(jnp.bfloat16) for w in (w0, w1, w2))

    bn = n if n <= block_n else block_n
    assert n % bn == 0, "batch must be divisible by the row tile"

    return pl.pallas_call(
        _encoder_kernel,
        out_shape=jax.ShapeDtypeStruct((n, d), jnp.float32),
        grid_spec=pltpu.PrefetchScalarGridSpec(
            num_scalar_prefetch=0,
            grid=(n // bn,),
            in_specs=[
                pl.BlockSpec((bn, f), lambda i: (i, 0)),
                pl.BlockSpec((f, hdp), lambda i: (0, 0)),
                pl.BlockSpec((1, hdp), lambda i: (0, 0)),
                pl.BlockSpec((hdp, hdp), lambda i: (0, 0)),
                pl.BlockSpec((1, hdp), lambda i: (0, 0)),
                pl.BlockSpec((hdp, d), lambda i: (0, 0)),
                pl.BlockSpec((1, d), lambda i: (0, 0)),
            ],
            out_specs=pl.BlockSpec((bn, d), lambda i: (i, 0)),
        ),
        compiler_params=pltpu.CompilerParams(
            dimension_semantics=("parallel",),
            vmem_limit_bytes=_VMEM_LIMIT),
    )(x16, w0, b0, w1, b1, w2, b2)


# ----------------------------------------------------------------------------
# ASAR loss kernel, tiled over the queue K dimension.
# ----------------------------------------------------------------------------
def _make_loss_kernel(bn, bk, nc, max_entropy):
    inv_t1 = 1.0 / T1
    inv_t2 = 1.0 / T2
    inv_me = 1.0 / max_entropy

    def kernel(q_ref, k_ref, queue_ref, loss_ref, kout_ref,
               qn_ref, kn_ref, m_pd_ref, z_pd_ref, s_pd_ref,
               m_ng_ref, z_ng_ref, cpd_ref, cng_ref):
        kb = pl.program_id(1)
        last = pl.num_programs(1) - 1

        @pl.when(kb == 0)
        def _init():
            qr = q_ref[...]
            kr = k_ref[...]
            # F.normalize(x, dim=1) == x / max(||x||, 1e-12); rsqrt goes to EUP.
            qn_ref[...] = qr * jax.lax.rsqrt(
                jnp.maximum(jnp.sum(qr * qr, axis=1, keepdims=True), 1e-24))
            kn_ref[...] = kr * jax.lax.rsqrt(
                jnp.maximum(jnp.sum(kr * kr, axis=1, keepdims=True), 1e-24))
            m_pd_ref[...] = jnp.full_like(m_pd_ref, _NEG_BIG)
            z_pd_ref[...] = jnp.zeros_like(z_pd_ref)
            s_pd_ref[...] = jnp.zeros_like(s_pd_ref)
            m_ng_ref[...] = jnp.full_like(m_ng_ref, _NEG_BIG)
            z_ng_ref[...] = jnp.zeros_like(z_ng_ref)
            cpd_ref[...] = jnp.full_like(cpd_ref, _NEG_BIG)
            cng_ref[...] = jnp.zeros_like(cng_ref)

        # One queue tile, DMA'd once, used by both matmuls.
        qu = queue_ref[...]                                             # (C, bk)
        pd = jnp.dot(kn_ref[...], qu, preferred_element_type=jnp.float32) * inv_t2
        ng = jnp.dot(qn_ref[...], qu, preferred_element_type=jnp.float32) * inv_t1

        # --- online softmax statistics of logits_pd (entropy term) ----------
        m_old = m_pd_ref[...]
        m_new = jnp.maximum(m_old, jnp.max(pd, axis=1, keepdims=True))
        alpha = jnp.exp(m_old - m_new)
        e = jnp.exp(pd - m_new)
        z_pd_ref[...] = alpha * z_pd_ref[...] + jnp.sum(e, axis=1, keepdims=True)
        s_pd_ref[...] = alpha * s_pd_ref[...] + jnp.sum(e * pd, axis=1, keepdims=True)
        m_pd_ref[...] = m_new

        # --- online logsumexp of l_neg (final cross-entropy normalizer) -----
        g_old = m_ng_ref[...]
        g_new = jnp.maximum(g_old, jnp.max(ng, axis=1, keepdims=True))
        z_ng_ref[...] = (jnp.exp(g_old - g_new) * z_ng_ref[...]
                         + jnp.sum(jnp.exp(ng - g_new), axis=1, keepdims=True))
        m_ng_ref[...] = g_new

        # --- running top-NN_NUM of logits_pd with paired l_neg values -------
        # Replaces the (N, K) hard-label scatter of the reference.  Exact f32
        # ties would co-select; probability ~0 for matmul outputs.
        pd_w = pd
        cpd_w = cpd_ref[...]
        cng_w = cng_ref[...]
        lane = jax.lax.broadcasted_iota(jnp.int32, (bn, nc), 1)
        new_cpd = jnp.full((bn, nc), _NEG_BIG, jnp.float32)
        new_cng = jnp.zeros((bn, nc), jnp.float32)
        for s in range(NN_NUM):
            mx = jnp.maximum(jnp.max(pd_w, axis=1, keepdims=True),
                             jnp.max(cpd_w, axis=1, keepdims=True))
            sel_t = pd_w == mx
            sel_c = cpd_w == mx
            ngv = (jnp.sum(jnp.where(sel_t, ng, 0.0), axis=1, keepdims=True)
                   + jnp.sum(jnp.where(sel_c, cng_w, 0.0), axis=1, keepdims=True))
            pd_w = jnp.where(sel_t, _NEG_BIG, pd_w)
            cpd_w = jnp.where(sel_c, _NEG_BIG, cpd_w)
            new_cpd = jnp.where(lane == s, mx, new_cpd)
            new_cng = jnp.where(lane == s, ngv, new_cng)
        cpd_ref[...] = new_cpd
        cng_ref[...] = new_cng

        @pl.when(kb == last)
        def _finalize():
            qv = qn_ref[...]
            kv = kn_ref[...]
            l_pos = jnp.sum(qv * kv, axis=1, keepdims=True) * inv_t1

            # entropy(softmax(logits_pd)) = logZ_pd - E_p[logit]
            log_z_pd = m_pd_ref[...] + jnp.log(z_pd_ref[...])
            entropy = log_z_pd - s_pd_ref[...] / z_pd_ref[...]
            c = 1.0 - entropy * inv_me

            # log-softmax normalizer over [l_pos, l_neg]
            m_all = jnp.maximum(m_ng_ref[...], l_pos)
            z_all = (jnp.exp(m_ng_ref[...] - m_all) * z_ng_ref[...]
                     + jnp.exp(l_pos - m_all))
            log_z = m_all + jnp.log(z_all)

            # labels = [1, hard*c] / (1 + NN_NUM*c) with hard = NN_NUM ones/row:
            # loss_row = logZ - (l_pos + c * sum_top5(l_neg)) / (1 + NN_NUM*c)
            s_top = jnp.sum(cng_ref[...], axis=1, keepdims=True)
            loss_ref[...] = log_z - (l_pos + c * s_top) / (1.0 + NN_NUM * c)
            kout_ref[...] = kv

    return kernel


def asar_loss(q, k, queue, max_entropy, *, block_k=512, block_n=128):
    n, c = q.shape
    k_size = queue.shape[1]
    bk = min(block_k, k_size)
    assert k_size % bk == 0, "queue size must be divisible by the K tile"
    bn = n if n <= block_n else block_n
    assert n % bn == 0, "batch must be divisible by the row tile"
    nc = 128  # lane-dense candidate scratch; top-NN_NUM live in the first lanes

    # NOTE: queue dots are kept in f32 to preserve exact top-k parity with the
    # f32 reference; for production on v7x the queue can be stored/fed as bf16.
    loss_rows, k_norm = pl.pallas_call(
        _make_loss_kernel(bn, bk, nc, float(max_entropy)),
        out_shape=(jax.ShapeDtypeStruct((n, 1), jnp.float32),
                   jax.ShapeDtypeStruct((n, c), jnp.float32)),
        grid_spec=pltpu.PrefetchScalarGridSpec(
            num_scalar_prefetch=0,
            grid=(n // bn, k_size // bk),
            in_specs=[
                pl.BlockSpec((bn, c), lambda i, j: (i, 0)),
                pl.BlockSpec((bn, c), lambda i, j: (i, 0)),
                pl.BlockSpec((c, bk), lambda i, j: (0, j)),
            ],
            out_specs=[
                pl.BlockSpec((bn, 1), lambda i, j: (i, 0)),
                pl.BlockSpec((bn, c), lambda i, j: (i, 0)),
            ],
            scratch_shapes=[
                pltpu.VMEM((bn, c), jnp.float32),    # normalized q
                pltpu.VMEM((bn, c), jnp.float32),    # normalized k
                pltpu.VMEM((bn, 1), jnp.float32),    # running max  of logits_pd
                pltpu.VMEM((bn, 1), jnp.float32),    # running sum  exp(logits_pd)
                pltpu.VMEM((bn, 1), jnp.float32),    # running sum  exp*logit
                pltpu.VMEM((bn, 1), jnp.float32),    # running max  of l_neg
                pltpu.VMEM((bn, 1), jnp.float32),    # running sum  exp(l_neg)
                pltpu.VMEM((bn, nc), jnp.float32),   # top-5 logits_pd values
                pltpu.VMEM((bn, nc), jnp.float32),   # paired l_neg values
            ]),
        compiler_params=pltpu.CompilerParams(
            dimension_semantics=("parallel", "arbitrary"),
            vmem_limit_bytes=_VMEM_LIMIT),
    )(q, k, queue)
    return jnp.mean(loss_rows), k_norm


# ----------------------------------------------------------------------------
# Full ASAR.forward (pretrain path, epoch <= 150 branch)
# ----------------------------------------------------------------------------
def asar_forward(im_q, im_k, params_q, params_k, queue, queue_ptr, shuffle_key, epoch):
    del epoch  # only the epoch <= 150 branch is implemented
    # momentum update of key encoder (no_grad, elementwise glue)
    params_k = jax.tree_util.tree_map(
        lambda pk, pq: pk * MOMENTUM + pq * (1.0 - MOMENTUM), params_k, params_q)

    n = im_q.shape[0]
    q = encoder_forward(im_q.reshape(n, -1), params_q)

    # batch shuffle / unshuffle (kept for fidelity; synthetic encoder has no BN)
    idx_shuffle = jax.random.permutation(shuffle_key, n)
    idx_unshuffle = jnp.argsort(idx_shuffle)
    k = encoder_forward(im_k.reshape(n, -1)[idx_shuffle], params_k)
    k = k[idx_unshuffle]

    max_entropy = math.log(queue.shape[1])
    loss, k_norm = asar_loss(q, k, queue, max_entropy)

    # _dequeue_and_enqueue(k): reuse the kernel-normalized k (second output)
    new_queue = jax.lax.dynamic_update_slice(queue, k_norm.T, (0, queue_ptr))
    new_ptr = (queue_ptr + n) % queue.shape[1]
    # TODO(synk): epoch > 150 branch (autograd of loss_act w.r.t. k1 + KMeans-based
    # sample selection before enqueue) has no clean Pallas equivalent; not implemented.
    return loss, params_k, new_queue, new_ptr


# ----------------------------------------------------------------------------
# Pure-JAX references for validation
# ----------------------------------------------------------------------------
def _ref_encoder(x_flat, p):
    # matches the Pallas encoder's bf16-input / f32-accumulate matmuls
    h = jnp.dot(x_flat.astype(jnp.bfloat16), p["w0"].astype(jnp.bfloat16),
                preferred_element_type=jnp.float32) + p["b0"]
    h = jnp.dot(h.astype(jnp.bfloat16), p["w1"].astype(jnp.bfloat16),
                preferred_element_type=jnp.float32) + p["b1"]
    h = jnp.maximum(h, 0.0)
    return jnp.dot(h.astype(jnp.bfloat16), p["w2"].astype(jnp.bfloat16),
                   preferred_element_type=jnp.float32) + p["b2"]


def _ref_loss(q_raw, k_raw, queue, max_entropy):
    q = q_raw / jnp.maximum(jnp.linalg.norm(q_raw, axis=1, keepdims=True), 1e-12)
    k = k_raw / jnp.maximum(jnp.linalg.norm(k_raw, axis=1, keepdims=True), 1e-12)
    logits_pd = (k @ queue) / T2
    _, nn_idx = jax.lax.top_k(logits_pd, NN_NUM)
    hard = jnp.sum(jax.nn.one_hot(nn_idx, queue.shape[1], dtype=jnp.float32), axis=1)
    p = jax.nn.softmax(logits_pd, axis=1)
    logp = jax.nn.log_softmax(logits_pd, axis=1)
    entropy = -jnp.sum(p * logp, axis=1, keepdims=True)
    c = 1.0 - entropy / max_entropy
    labels = jnp.concatenate([jnp.ones((q.shape[0], 1)), hard * c], axis=1)
    labels = labels / jnp.sum(labels, axis=1, keepdims=True)
    l_pos = jnp.sum(q * k, axis=1, keepdims=True)
    l_neg = q @ queue
    logits = jnp.concatenate([l_pos, l_neg], axis=1) / T1
    return jnp.mean(-jnp.sum(labels * jax.nn.log_softmax(logits, axis=1), axis=1))


# ----------------------------------------------------------------------------
def _init_encoder_params(key, in_feat, dim_mlp, feat_dim):
    k0, k1, k2, k3, k4, k5 = jax.random.split(key, 6)
    return {
        "w0": jax.random.normal(k0, (in_feat, dim_mlp), jnp.float32) / math.sqrt(in_feat),
        "b0": jax.random.normal(k1, (1, dim_mlp), jnp.float32) * 0.01,
        "w1": jax.random.normal(k2, (dim_mlp, dim_mlp), jnp.float32) / math.sqrt(dim_mlp),
        "b1": jax.random.normal(k3, (1, dim_mlp), jnp.float32) * 0.01,
        "w2": jax.random.normal(k4, (dim_mlp, feat_dim), jnp.float32) / math.sqrt(dim_mlp),
        "b2": jax.random.normal(k5, (1, feat_dim), jnp.float32) * 0.01,
    }


if __name__ == "__main__":
    key = jax.random.PRNGKey(0)
    k_imq, k_imk, k_enc, k_queue, k_shuf = jax.random.split(key, 5)

    # small shapes: batch=8, NCHW input (8, 3, 16, 16); dim_mlp=32; queue K=128
    N, C, H, W = 8, 3, 16, 16
    K_QUEUE = 128
    DIM_MLP = 32

    im_q = jax.random.normal(k_imq, (N, C, H, W), jnp.float32)
    im_k = jax.random.normal(k_imk, (N, C, H, W), jnp.float32)

    params_q = _init_encoder_params(k_enc, C * H * W, DIM_MLP, FEATURE_DIM)
    # encoder_k initialized as a copy of encoder_q (param_k.data.copy_(param_q.data))
    params_k = jax.tree_util.tree_map(lambda x: x, params_q)

    # queue: randn(128, K) normalized along dim=0
    queue = jax.random.normal(k_queue, (FEATURE_DIM, K_QUEUE), jnp.float32)
    queue = queue / jnp.maximum(jnp.linalg.norm(queue, axis=0, keepdims=True), 1e-12)
    queue_ptr = 0

    loss, new_params_k, new_queue, new_ptr = asar_forward(
        im_q, im_k, params_q, params_k, queue, queue_ptr, k_shuf, epoch=1)
    loss = jax.block_until_ready(loss)
    jax.block_until_ready(new_queue)

    # --- validate against pure-JAX references ---
    pk_upd = jax.tree_util.tree_map(
        lambda pk, pq: pk * MOMENTUM + pq * (1.0 - MOMENTUM), params_k, params_q)
    q_pallas = encoder_forward(im_q.reshape(N, -1), params_q)
    k_pallas = encoder_forward(im_k.reshape(N, -1), pk_upd)

    # encoder kernel vs identically-cast bf16 reference
    q_ref = _ref_encoder(im_q.reshape(N, -1), params_q)
    assert jnp.allclose(q_pallas, q_ref, rtol=1e-2, atol=1e-2)

    # loss kernel vs faithful reference on the same q/k features
    loss_ref = _ref_loss(q_pallas, k_pallas, queue, math.log(K_QUEUE))
    assert jnp.allclose(loss, loss_ref, rtol=1e-3, atol=1e-3), (loss, loss_ref)

    # queue enqueue used the kernel-normalized k (ptr was 0)
    k_norm_ref = k_pallas / jnp.maximum(
        jnp.linalg.norm(k_pallas, axis=1, keepdims=True), 1e-12)
    assert jnp.allclose(new_queue[:, :N], k_norm_ref.T, rtol=1e-3, atol=1e-3)

    print("KERNEL_OK")
</pallas_src>

<mosaic_0001>
module attributes {stable_mosaic.version = 11 : i64} {
  func.func @_encoder_kernel(%arg0: i32, %arg1: memref<8x768xbf16, #tpu.memory_space<vmem>>, %arg2: memref<768x128xbf16, #tpu.memory_space<vmem>>, %arg3: memref<1x128xf32, #tpu.memory_space<vmem>>, %arg4: memref<128x128xbf16, #tpu.memory_space<vmem>>, %arg5: memref<1x128xf32, #tpu.memory_space<vmem>>, %arg6: memref<128x128xbf16, #tpu.memory_space<vmem>>, %arg7: memref<1x128xf32, #tpu.memory_space<vmem>>, %arg8: memref<8x128xf32, #tpu.memory_space<vmem>>) attributes {dimension_semantics = [#tpu.dimension_semantics<parallel>], iteration_bounds = array<i64: 1>, scalar_prefetch = 0 : i64, scratch_operands = 0 : i64, tpu.core_type = #tpu.core_type<tc>, window_params = [{transform_indices = @transform_0, window_bounds = array<i64: 8, 768>}, {pipeline_mode = #tpu.pipeline_mode<synchronous>, transform_indices = @transform_1, window_bounds = array<i64: 768, 128>}, {pipeline_mode = #tpu.pipeline_mode<synchronous>, transform_indices = @transform_2, window_bounds = array<i64: 1, 128>}, {pipeline_mode = #tpu.pipeline_mode<synchronous>, transform_indices = @transform_3, window_bounds = array<i64: 128, 128>}, {pipeline_mode = #tpu.pipeline_mode<synchronous>, transform_indices = @transform_4, window_bounds = array<i64: 1, 128>}, {pipeline_mode = #tpu.pipeline_mode<synchronous>, transform_indices = @transform_5, window_bounds = array<i64: 128, 128>}, {pipeline_mode = #tpu.pipeline_mode<synchronous>, transform_indices = @transform_6, window_bounds = array<i64: 1, 128>}, {transform_indices = @transform_7, window_bounds = array<i64: 8, 128>}]} {
    %c0 = arith.constant 0 : index
    %c0_0 = arith.constant 0 : index
    %0 = vector.load %arg1[%c0, %c0_0] : memref<8x768xbf16, #tpu.memory_space<vmem>>, vector<8x768xbf16>
    %c0_1 = arith.constant 0 : index
    %c0_2 = arith.constant 0 : index
    %1 = vector.load %arg2[%c0_1, %c0_2] : memref<768x128xbf16, #tpu.memory_space<vmem>>, vector<768x128xbf16>
    %cst = arith.constant dense<0.000000e+00> : vector<8x128xf32>
    %2 = tpu.matmul %0, %1, %cst {dimension_numbers = #tpu.dot_dimension_numbers<[1], [0], [0], [1], [0, 0, 1, 1], [], []>} : vector<8x768xbf16>, vector<768x128xbf16>, vector<8x128xf32> -> vector<8x128xf32>
    %c0_3 = arith.constant 0 : index
    %c0_4 = arith.constant 0 : index
    %3 = vector.load %arg3[%c0_3, %c0_4] : memref<1x128xf32, #tpu.memory_space<vmem>>, vector<1x128xf32>
    %4 = vector.broadcast %3 : vector<1x128xf32> to vector<8x128xf32>
    %5 = arith.addf %2, %4 : vector<8x128xf32>
    %6 = arith.truncf %5 : vector<8x128xf32> to vector<8x128xbf16>
    %c0_5 = arith.constant 0 : index
    %c0_6 = arith.constant 0 : index
    %7 = vector.load %arg4[%c0_5, %c0_6] : memref<128x128xbf16, #tpu.memory_space<vmem>>, vector<128x128xbf16>
    %cst_7 = arith.constant dense<0.000000e+00> : vector<8x128xf32>
    %8 = tpu.matmul %6, %7, %cst_7 {dimension_numbers = #tpu.dot_dimension_numbers<[1], [0], [0], [1], [0, 0, 1, 1], [], []>} : vector<8x128xbf16>, vector<128x128xbf16>, vector<8x128xf32> -> vector<8x128xf32>
    %c0_8 = arith.constant 0 : index
    %c0_9 = arith.constant 0 : index
    %9 = vector.load %arg5[%c0_8, %c0_9] : memref<1x128xf32, #tpu.memory_space<vmem>>, vector<1x128xf32>
    %10 = vector.broadcast %9 : vector<1x128xf32> to vector<8x128xf32>
    %11 = arith.addf %8, %10 : vector<8x128xf32>
    %cst_10 = arith.constant 0.000000e+00 : f32
    %12 = vector.broadcast %cst_10 : f32 to vector<8x128xf32>
    %13 = arith.maximumf %11, %12 : vector<8x128xf32>
    %14 = arith.truncf %13 : vector<8x128xf32> to vector<8x128xbf16>
    %c0_11 = arith.constant 0 : index
    %c0_12 = arith.constant 0 : index
    %15 = vector.load %arg6[%c0_11, %c0_12] : memref<128x128xbf16, #tpu.memory_space<vmem>>, vector<128x128xbf16>
    %cst_13 = arith.constant dense<0.000000e+00> : vector<8x128xf32>
    %16 = tpu.matmul %14, %15, %cst_13 {dimension_numbers = #tpu.dot_dimension_numbers<[1], [0], [0], [1], [0, 0, 1, 1], [], []>} : vector<8x128xbf16>, vector<128x128xbf16>, vector<8x128xf32> -> vector<8x128xf32>
    %c0_14 = arith.constant 0 : index
    %c0_15 = arith.constant 0 : index
    %17 = vector.load %arg7[%c0_14, %c0_15] : memref<1x128xf32, #tpu.memory_space<vmem>>, vector<1x128xf32>
    %18 = vector.broadcast %17 : vector<1x128xf32> to vector<8x128xf32>
    %19 = arith.addf %16, %18 : vector<8x128xf32>
    %c0_16 = arith.constant 0 : index
    %c0_17 = arith.constant 0 : index
    %20 = vector.load %arg8[%c0_16, %c0_17] : memref<8x128xf32, #tpu.memory_space<vmem>>, vector<8x128xf32>
    tpu.vector_store %arg8[%c0_16, %c0_17], %19 {strides = array<i32>} : memref<8x128xf32, #tpu.memory_space<vmem>>, vector<8x128xf32>,
    return
  }
  func.func @transform_0(%arg0: i32) -> (i32, i32) {
    %c0_i32 = arith.constant 0 : i32
    %c0_i32_0 = arith.constant 0 : i32
    return %arg0, %c0_i32 : i32, i32
  }
  func.func @transform_1(%arg0: i32) -> (i32, i32) {
    %c0_i32 = arith.constant 0 : i32
    %c0_i32_0 = arith.constant 0 : i32
    %c0_i32_1 = arith.constant 0 : i32
    return %c0_i32, %c0_i32_0 : i32, i32
  }
  func.func @transform_2(%arg0: i32) -> (i32, i32) {
    %c0_i32 = arith.constant 0 : i32
    %c0_i32_0 = arith.constant 0 : i32
    %c0_i32_1 = arith.constant 0 : i32
    return %c0_i32, %c0_i32_0 : i32, i32
  }
  func.func @transform_3(%arg0: i32) -> (i32, i32) {
    %c0_i32 = arith.constant 0 : i32
    %c0_i32_0 = arith.constant 0 : i32
    %c0_i32_1 = arith.constant 0 : i32
    return %c0_i32, %c0_i32_0 : i32, i32
  }
  func.func @transform_4(%arg0: i32) -> (i32, i32) {
    %c0_i32 = arith.constant 0 : i32
    %c0_i32_0 = arith.constant 0 : i32
    %c0_i32_1 = arith.constant 0 : i32
    return %c0_i32, %c0_i32_0 : i32, i32
  }
  func.func @transform_5(%arg0: i32) -> (i32, i32) {
    %c0_i32 = arith.constant 0 : i32
    %c0_i32_0 = arith.constant 0 : i32
    %c0_i32_1 = arith.constant 0 : i32
    return %c0_i32, %c0_i32_0 : i32, i32
  }
  func.func @transform_6(%arg0: i32) -> (i32, i32) {
    %c0_i32 = arith.constant 0 : i32
    %c0_i32_0 = arith.constant 0 : i32
    %c0_i32_1 = arith.constant 0 : i32
    return %c0_i32, %c0_i32_0 : i32, i32
  }
  func.func @transform_7(%arg0: i32) -> (i32, i32) {
    %c0_i32 = arith.constant 0 : i32
    %c0_i32_0 = arith.constant 0 : i32
    return %arg0, %c0_i32 : i32, i32
  }
}

</mosaic_0001>

<llo_original>
// kernel: tpu_custom_call.1
$region0: #{tpu_custom_call.1}
  #allocation0 [shape = 'u32[]', space=smem, size = 0x4, offset = 0x4, fixed_abs, tag = 'smem constant byte address 0x4 - core index']
  #allocation1 [shape = 'u32[144,128]{1,0:T(1,128)}', space=vmem, size = 0x12000, scoped, tag = 'internal scratch']
  %s0 = inlined_call_operand.hbm [shape: bf16[8,768], index: 0, kind: input, shape index: {}]
  %s1 = inlined_call_operand.hbm [shape: bf16[768,128], index: 1, kind: input, shape index: {}]
  %s2 = inlined_call_operand.vmem [shape: f32[1,128], index: 2, kind: input, shape index: {}]
  %s3 = inlined_call_operand.hbm [shape: bf16[128,128], index: 3, kind: input, shape index: {}]
  %s4 = inlined_call_operand.vmem [shape: f32[1,128], index: 4, kind: input, shape index: {}]
  %s5 = inlined_call_operand.hbm [shape: bf16[128,128], index: 5, kind: input, shape index: {}]
  %s6 = inlined_call_operand.vmem [shape: f32[1,128], index: 6, kind: input, shape index: {}]
  %s7 = inlined_call_operand.hbm [shape: f32[8,128], index: 7, kind: output, shape index: {}]
  %s8 = sld [smem:[#allocation0]]
  $region54: #{tpu_custom_call.1} parent=0
    _
  %s10 = ssub.s32 1, %s8
  %s11 = scalar_select 0, %s10, %s8
  $region1: #{tpu_custom_call.1} parent=0
    #allocation2 [shape = 'u8[12288]{0}', space=vmem, size = 0x3000, scoped, tag = 'input window, operand 0, single buffered']
    #allocation3 [shape = 's32[1]{0}', space=sflag, size = 0x4, scoped, tag = 'scoped memory for tpu_custom_call.1']
    #allocation4 [shape = 's32[1]{0}', space=sflag, size = 0x4, scoped, tag = 'scoped memory for tpu_custom_call.1']
    #allocation5 [shape = 'u8[196608]{0}', space=vmem, size = 0x30000, scoped, tag = 'input window, operand 1, single buffered']
    #allocation6 [shape = 's32[1]{0}', space=sflag, size = 0x4, scoped, tag = 'scoped memory for tpu_custom_call.1']
    #allocation7 [shape = 'u8[32768]{0}', space=vmem, size = 0x8000, scoped, tag = 'input window, operand 3, single buffered']
    #allocation8 [shape = 'u8[32768]{0}', space=vmem, size = 0x8000, scoped, tag = 'input window, operand 5, single buffered']
    #allocation9 [shape = 's32[1]{0}', space=sflag, size = 0x4, scoped, tag = 'scoped memory for tpu_custom_call.1']
    #allocation10 [shape = 'u8[4096]{0}', space=vmem, size = 0x1000, scoped, tag = 'output window, operand 0, single buffered']
    %12 = vsyncpa [#allocation3], 0
    %13 = vsyncpa [#allocation6], 0
    %14 = vsyncpa [#allocation9], 0
    %15 = vsyncpa [#allocation4], 0
    // Predicated region
    $region2: #{tpu_custom_call.1} parent=1 // pred_check
      _
    $region3: #{tpu_custom_call.1} parent=1 // pred_check_branch
      %17 = sbr.rel (0) target = $region5
    $region4: #{tpu_custom_call.1} parent=1 // pred_region
      %s19 = ssub.s32 384, 384
      %20 = vsyncadd [#allocation3], %s19
      %s22 = sshll.u32 [#allocation2], 4
      %s23 = int_to_ptr.vmem [resolvable:$true] %s22
      %25 = dma.hbm_to_vmem [thread:$0]  %s0, 384, %s23, [#allocation3]
    $region5: #{tpu_custom_call.1} parent=1 // pred_fallthru
      _
    // Predicated region
    $region6: #{tpu_custom_call.1} parent=1 // pred_check
      _
    $region7: #{tpu_custom_call.1} parent=1 // pred_check_branch
      %27 = sbr.rel (0) target = $region9
    $region8: #{tpu_custom_call.1} parent=1 // pred_region
      %s29 = ssub.s32 6144, 6144
      %30 = vsyncadd [#allocation6], %s29
      %s31 = sshll.u32 [#allocation5], 4
      %s32 = int_to_ptr.vmem [resolvable:$true] %s31
      %37 = dma.hbm_to_vmem [thread:$0]  %s1, 6144, %s32, [#allocation6], 64, 64, 4
    $region9: #{tpu_custom_call.1} parent=1 // pred_fallthru
      _
    // Predicated region
    $region10: #{tpu_custom_call.1} parent=1 // pred_check
      _
    $region11: #{tpu_custom_call.1} parent=1 // pred_check_branch
      %39 = sbr.rel (0) target = $region13
    $region12: #{tpu_custom_call.1} parent=1 // pred_region
      _
    $region13: #{tpu_custom_call.1} parent=1 // pred_fallthru
      _
    // Predicated region
    $region14: #{tpu_custom_call.1} parent=1 // pred_check
      _
    $region15: #{tpu_custom_call.1} parent=1 // pred_check_branch
      %41 = sbr.rel (0) target = $region17
    $region16: #{tpu_custom_call.1} parent=1 // pred_region
      %s43 = ssub.s32 1024, 1024
      %44 = vsyncadd [#allocation6], %s43
      %s45 = sshll.u32 [#allocation7], 4
      %s46 = int_to_ptr.vmem [resolvable:$true] %s45
      %51 = dma.hbm_to_vmem [thread:$0]  %s3, 1024, %s46, [#allocation6], 64, 64, 4
    $region17: #{tpu_custom_call.1} parent=1 // pred_fallthru
      _
    // Predicated region
    $region18: #{tpu_custom_call.1} parent=1 // pred_check
      _
    $region19: #{tpu_custom_call.1} parent=1 // pred_check_branch
      %53 = sbr.rel (0) target = $region21
    $region20: #{tpu_custom_call.1} parent=1 // pred_region
      _
    $region21: #{tpu_custom_call.1} parent=1 // pred_fallthru
      _
    // Predicated region
    $region22: #{tpu_custom_call.1} parent=1 // pred_check
      _
    $region23: #{tpu_custom_call.1} parent=1 // pred_check_branch
      %55 = sbr.rel (0) target = $region25
    $region24: #{tpu_custom_call.1} parent=1 // pred_region
      %s57 = ssub.s32 1024, 1024
      %58 = vsyncadd [#allocation9], %s57
      %s59 = sshll.u32 [#allocation8], 4
      %s60 = int_to_ptr.vmem [resolvable:$true] %s59
      %65 = dma.hbm_to_vmem [thread:$0]  %s5, 1024, %s60, [#allocation9], 64, 64, 4
    $region25: #{tpu_custom_call.1} parent=1 // pred_fallthru
      _
    // Predicated region
    $region26: #{tpu_custom_call.1} parent=1 // pred_check
      _
    $region27: #{tpu_custom_call.1} parent=1 // pred_check_branch
      %67 = sbr.rel (0) target = $region29
    $region28: #{tpu_custom_call.1} parent=1 // pred_region
      _
    $region29: #{tpu_custom_call.1} parent=1 // pred_fallthru
      _
    // Predicated region
    $region30: #{tpu_custom_call.1} parent=1 // pred_check
      _
    $region31: #{tpu_custom_call.1} parent=1 // pred_check_branch
      %69 = sbr.rel (0) target = $region33
    $region32: #{tpu_custom_call.1} parent=1 // pred_region
      %70 = dma.done [#allocation3], 384
    $region33: #{tpu_custom_call.1} parent=1 // pred_fallthru
      _
    // Predicated region
    $region34: #{tpu_custom_call.1} parent=1 // pred_check
      _
    $region35: #{tpu_custom_call.1} parent=1 // pred_check_branch
      %72 = sbr.rel (0) target = $region37
    $region36: #{tpu_custom_call.1} parent=1 // pred_region
      %73 = dma.done [#allocation6], 6144
    $region37: #{tpu_custom_call.1} parent=1 // pred_fallthru
      _
    // Predicated region
    $region38: #{tpu_custom_call.1} parent=1 // pred_check
      _
    $region39: #{tpu_custom_call.1} parent=1 // pred_check_branch
      %75 = sbr.rel (0) target = $region41
    $region40: #{tpu_custom_call.1} parent=1 // pred_region
      %76 = dma.done [#allocation6], 1024
    $region41: #{tpu_custom_call.1} parent=1 // pred_fallthru
      _
    // Predicated region
    $region42: #{tpu_custom_call.1} parent=1 // pred_check
      _
    $region43: #{tpu_custom_call.1} parent=1 // pred_check_branch
      %78 = sbr.rel (0) target = $region45
    $region44: #{tpu_custom_call.1} parent=1 // pred_region
      %79 = dma.done [#allocation9], 1024
    $region45: #{tpu_custom_call.1} parent=1 // pred_fallthru
      _
    %v81 = vld [vmem:[#allocation2] sm:$0xff]
    %v82 = vld [vmem:[#allocation2 + $0x8] sm:$0xff]
    %v83 = vld [vmem:[#allocation2 + $0x10] sm:$0xff]
    %v84 = vld [vmem:[#allocation5] sm:$0xf]
    %v85 = vld [vmem:[#allocation5 + $0x4] sm:$0xf]
    %v86 = vld [vmem:[#allocation5 + $0x8] sm:$0xf]
    %v87 = vld [vmem:[#allocation5 + $0xc] sm:$0xf]
    %v88 = vld [vmem:[#allocation5 + $0x10] sm:$0xf]
    %v89 = vld [vmem:[#allocation5 + $0x14] sm:$0xf]
    %v90 = vld [vmem:[#allocation5 + $0x18] sm:$0xf]
    %v91 = vld [vmem:[#allocation5 + $0x1c] sm:$0xf]
    %v92 = vld [vmem:[#allocation5 + $0x20] sm:$0xf]
    %v93 = vld [vmem:[#allocation5 + $0x24] sm:$0xf]
    %v94 = vld [vmem:[#allocation5 + $0x28] sm:$0xf]
    %v95 = vld [vmem:[#allocation5 + $0x2c] sm:$0xf]
    %v96 = vld [vmem:[#allocation5 + $0x30] sm:$0xf]
    %v97 = vld [vmem:[#allocation5 + $0x34] sm:$0xf]
    %v98 = vld [vmem:[#allocation5 + $0x38] sm:$0xf]
    %v99 = vld [vmem:[#allocation5 + $0x3c] sm:$0xf]
    %v100 = vld [vmem:[#allocation5 + $0x40] sm:$0xf]
    %v101 = vld [vmem:[#allocation5 + $0x44] sm:$0xf]
    %v102 = vld [vmem:[#allocation5 + $0x48] sm:$0xf]
    %v103 = vld [vmem:[#allocation5 + $0x4c] sm:$0xf]
    %v104 = vld [vmem:[#allocation5 + $0x50] sm:$0xf]
    %v105 = vld [vmem:[#allocation5 + $0x54] sm:$0xf]
    %v106 = vld [vmem:[#allocation5 + $0x58] sm:$0xf]
    %v107 = vld [vmem:[#allocation5 + $0x5c] sm:$0xf]
    %v108 = vld [vmem:[#allocation5 + $0x60] sm:$0xf]
    %v109 = vld [vmem:[#allocation5 + $0x64] sm:$0xf]
    %v110 = vld [vmem:[#allocation5 + $0x68] sm:$0xf]
    %v111 = vld [vmem:[#allocation5 + $0x6c] sm:$0xf]
    %v112 = vld [vmem:[#allocation5 + $0x70] sm:$0xf]
    %v113 = vld [vmem:[#allocation5 + $0x74] sm:$0xf]
    %v114 = vld [vmem:[#allocation5 + $0x78] sm:$0xf]
    %v115 = vld [vmem:[#allocation5 + $0x7c] sm:$0xf]
    %v116 = vld [vmem:[#allocation5 + $0x80] sm:$0xf]
    %v117 = vld [vmem:[#allocation5 + $0x84] sm:$0xf]
    %v118 = vld [vmem:[#allocation5 + $0x88] sm:$0xf]
    %v119 = vld [vmem:[#allocation5 + $0x8c] sm:$0xf]
    %v120 = vld [vmem:[#allocation5 + $0x90] sm:$0xf]
    %v121 = vld [vmem:[#allocation5 + $0x94] sm:$0xf]
    %v122 = vld [vmem:[#allocation5 + $0x98] sm:$0xf]
    %v123 = vld [vmem:[#allocation5 + $0x9c] sm:$0xf]
    %v124 = vld [vmem:[#allocation5 + $0xa0] sm:$0xf]
    %v125 = vld [vmem:[#allocation5 + $0xa4] sm:$0xf]
    %v126 = vld [vmem:[#allocation5 + $0xa8] sm:$0xf]
    %v127 = vld [vmem:[#allocation5 + $0xac] sm:$0xf]
    %v128 = vld [vmem:[#allocation5 + $0xb0] sm:$0xf]
    %v129 = vld [vmem:[#allocation5 + $0xb4] sm:$0xf]
    %v130 = vld [vmem:[#allocation5 + $0xb8] sm:$0xf]
    %v131 = vld [vmem:[#allocation5 + $0xbc] sm:$0xf]
    %v132 = vld [vmem:[#allocation5 + $0xc0] sm:$0xf]
    %v133 = vld [vmem:[#allocation5 + $0xc4] sm:$0xf]
    %v134 = vld [vmem:[#allocation5 + $0xc8] sm:$0xf]
    %v135 = vld [vmem:[#allocation5 + $0xcc] sm:$0xf]
    %v136 = vld [vmem:[#allocation5 + $0xd0] sm:$0xf]
    %v137 = vld [vmem:[#allocation5 + $0xd4] sm:$0xf]
    %v138 = vld [vmem:[#allocation5 + $0xd8] sm:$0xf]
    %v139 = vld [vmem:[#allocation5 + $0xdc] sm:$0xf]
    %v140 = vld [vmem:[#allocation5 + $0xe0] sm:$0xf]
    %v141 = vld [vmem:[#allocation5 + $0xe4] sm:$0xf]
    %v142 = vld [vmem:[#allocation5 + $0xe8] sm:$0xf]
    %v143 = vld [vmem:[#allocation5 + $0xec] sm:$0xf]
    %v144 = vld [vmem:[#allocation5 + $0xf0] sm:$0xf]
    %v145 = vld [vmem:[#allocation5 + $0xf4] sm:$0xf]
    %v146 = vld [vmem:[#allocation5 + $0xf8] sm:$0xf]
    %v147 = vld [vmem:[#allocation5 + $0xfc] sm:$0xf]
    %v148 = vld [vmem:[#allocation5 + $0x100] sm:$0xf]
    %v149 = vld [vmem:[#allocation5 + $0x104] sm:$0xf]
    %v150 = vld [vmem:[#allocation5 + $0x108] sm:$0xf]
    %v151 = vld [vmem:[#allocation5 + $0x10c] sm:$0xf]
    %v152 = vld [vmem:[#allocation5 + $0x110] sm:$0xf]
    %v153 = vld [vmem:[#allocation5 + $0x114] sm:$0xf]
    %v154 = vld [vmem:[#allocation5 + $0x118] sm:$0xf]
    %v155 = vld [vmem:[#allocation5 + $0x11c] sm:$0xf]
    %v156 = vld [vmem:[#allocation5 + $0x120] sm:$0xf]
    %v157 = vld [vmem:[#allocation5 + $0x124] sm:$0xf]
    %v158 = vld [vmem:[#allocation5 + $0x128] sm:$0xf]
    %v159 = vld [vmem:[#allocation5 + $0x12c] sm:$0xf]
    %v160 = vld [vmem:[#allocation5 + $0x130] sm:$0xf]
    %v161 = vld [vmem:[#allocation5 + $0x134] sm:$0xf]
    %v162 = vld [vmem:[#allocation5 + $0x138] sm:$0xf]
    %v163 = vld [vmem:[#allocation5 + $0x13c] sm:$0xf]
    %v164 = vld [vmem:[#allocation5 + $0x140] sm:$0xf]
    %v165 = vld [vmem:[#allocation5 + $0x144] sm:$0xf]
    %v166 = vld [vmem:[#allocation5 + $0x148] sm:$0xf]
    %v167 = vld [vmem:[#allocation5 + $0x14c] sm:$0xf]
    %v168 = vld [vmem:[#allocation5 + $0x150] sm:$0xf]
    %v169 = vld [vmem:[#allocation5 + $0x154] sm:$0xf]
    %v170 = vld [vmem:[#allocation5 + $0x158] sm:$0xf]
    %v171 = vld [vmem:[#allocation5 + $0x15c] sm:$0xf]
    %v172 = vld [vmem:[#allocation5 + $0x160] sm:$0xf]
    %v173 = vld [vmem:[#allocation5 + $0x164] sm:$0xf]
    %v174 = vld [vmem:[#allocation5 + $0x168] sm:$0xf]
    %v175 = vld [vmem:[#allocation5 + $0x16c] sm:$0xf]
    %v176 = vld [vmem:[#allocation5 + $0x170] sm:$0xf]
    %v177 = vld [vmem:[#allocation5 + $0x174] sm:$0xf]
    %v178 = vld [vmem:[#allocation5 + $0x178] sm:$0xf]
    %v179 = vld [vmem:[#allocation5 + $0x17c] sm:$0xf]
    %v180 = vld [vmem:[%s2] sm:$0x1]
    %v182 = vlaneseq
    %v183 = vshrl.u32 %v182, 7
    %v184 = vsub.s32 0, %v183
    %v185 = vrot.slane %v180, %v184
    %v190 = vunpack.c.l.b16 %v81
    %v191 = vunpack.c.h.b16 %v81
    %v192 = vunpack.c.l.b16 %v82
    %v193 = vunpack.c.h.b16 %v82
    %v194 = vunpack.c.l.b16 %v83
    %v195 = vunpack.c.h.b16 %v83
    %v196 = vpack.c.b16 %v190, %v190
    %v197 = vpack.c.b16 %v191, %v191
    %v198 = vpack.c.b16 %v192, %v192
    %v199 = vpack.c.b16 %v193, %v193
    %v200 = vpack.c.b16 %v194, %v194
    %v201 = vpack.c.b16 %v195, %v195
    %v304 = vunpack.c.l.b16 %v84
    %v305 = vunpack.c.l.b16 %v85
    %v306 = vunpack.c.l.b16 %v86
    %v307 = vunpack.c.l.b16 %v87
    %v308 = vunpack.c.l.b16 %v88
    %v309 = vunpack.c.l.b16 %v89
    %v310 = vunpack.c.l.b16 %v90
    %v311 = vunpack.c.l.b16 %v91
    %v312 = vunpack.c.l.b16 %v92
    %v313 = vunpack.c.l.b16 %v93
    %v314 = vunpack.c.l.b16 %v94
    %v315 = vunpack.c.l.b16 %v95
    %v316 = vunpack.c.l.b16 %v96
    %v317 = vunpack.c.l.b16 %v97
    %v318 = vunpack.c.l.b16 %v98
    %v319 = vunpack.c.l.b16 %v99
    %v320 = vunpack.c.l.b16 %v100
    %v321 = vunpack.c.l.b16 %v101
    %v322 = vunpack.c.l.b16 %v102
    %v323 = vunpack.c.l.b16 %v103
    %v324 = vunpack.c.l.b16 %v104
    %v325 = vunpack.c.l.b16 %v105
    %v326 = vunpack.c.l.b16 %v106
    %v327 = vunpack.c.l.b16 %v107
    %v328 = vunpack.c.l.b16 %v108
    %v329 = vunpack.c.l.b16 %v109
    %v330 = vunpack.c.l.b16 %v110
    %v331 = vunpack.c.l.b16 %v111
    %v332 = vunpack.c.l.b16 %v112
    %v333 = vunpack.c.l.b16 %v113
    %v334 = vunpack.c.l.b16 %v114
    %v335 = vunpack.c.l.b16 %v115
    %v336 = vunpack.c.l.b16 %v116
    %v337 = vunpack.c.l.b16 %v117
    %v338 = vunpack.c.l.b16 %v118
    %v339 = vunpack.c.l.b16 %v119
    %v340 = vunpack.c.l.b16 %v120
    %v341 = vunpack.c.l.b16 %v121
    %v342 = vunpack.c.l.b16 %v122
    %v343 = vunpack.c.l.b16 %v123
    %v344 = vunpack.c.l.b16 %v124
    %v345 = vunpack.c.l.b16 %v125
    %v346 = vunpack.c.l.b16 %v126
    %v347 = vunpack.c.l.b16 %v127
    %v348 = vunpack.c.l.b16 %v128
    %v349 = vunpack.c.l.b16 %v129
    %v350 = vunpack.c.l.b16 %v130
    %v351 = vunpack.c.l.b16 %v131
    %v352 = vunpack.c.l.b16 %v132
    %v353 = vunpack.c.l.b16 %v133
    %v354 = vunpack.c.l.b16 %v134
    %v355 = vunpack.c.l.b16 %v135
    %v356 = vunpack.c.l.b16 %v136
    %v357 = vunpack.c.l.b16 %v137
    %v358 = vunpack.c.l.b16 %v138
    %v359 = vunpack.c.l.b16 %v139
    %v360 = vunpack.c.l.b16 %v140
    %v361 = vunpack.c.l.b16 %v141
    %v362 = vunpack.c.l.b16 %v142
    %v363 = vunpack.c.l.b16 %v143
    %v364 = vunpack.c.l.b16 %v144
    %v365 = vunpack.c.l.b16 %v145
    %v366 = vunpack.c.l.b16 %v146
    %v367 = vunpack.c.l.b16 %v147
    %v368 = vunpack.c.l.b16 %v148
    %v369 = vunpack.c.l.b16 %v149
    %v370 = vunpack.c.l.b16 %v150
    %v371 = vunpack.c.l.b16 %v151
    %v372 = vunpack.c.l.b16 %v152
    %v373 = vunpack.c.l.b16 %v153
    %v374 = vunpack.c.l.b16 %v154
    %v375 = vunpack.c.l.b16 %v155
    %v376 = vunpack.c.l.b16 %v156
    %v377 = vunpack.c.l.b16 %v157
    %v378 = vunpack.c.l.b16 %v158
    %v379 = vunpack.c.l.b16 %v159
    %v380 = vunpack.c.l.b16 %v160
    %v381 = vunpack.c.l.b16 %v161
    %v382 = vunpack.c.l.b16 %v162
    %v383 = vunpack.c.l.b16 %v163
    %v384 = vunpack.c.l.b16 %v164
    %v385 = vunpack.c.l.b16 %v165
    %v386 = vunpack.c.l.b16 %v166
    %v387 = vunpack.c.l.b16 %v167
    %v388 = vunpack.c.l.b16 %v168
    %v389 = vunpack.c.l.b16 %v169
    %v390 = vunpack.c.l.b16 %v170
    %v391 = vunpack.c.l.b16 %v171
    %v392 = vunpack.c.l.b16 %v172
    %v393 = vunpack.c.l.b16 %v173
    %v394 = vunpack.c.l.b16 %v174
    %v395 = vunpack.c.l.b16 %v175
    %v396 = vunpack.c.l.b16 %v176
    %v397 = vunpack.c.l.b16 %v177
    %v398 = vunpack.c.l.b16 %v178
    %v399 = vunpack.c.l.b16 %v179
    %v400 = vpack.c.b16 %v305, %v304
    %v401 = vpack.c.b16 %v307, %v306
    %v402 = vpack.c.b16 %v309, %v308
    %v403 = vpack.c.b16 %v311, %v310
    %v404 = vpack.c.b16 %v313, %v312
    %v405 = vpack.c.b16 %v315, %v314
    %v406 = vpack.c.b16 %v317, %v316
    %v407 = vpack.c.b16 %v319, %v318
    %v408 = vpack.c.b16 %v321, %v320
    %v409 = vpack.c.b16 %v323, %v322
    %v410 = vpack.c.b16 %v325, %v324
    %v411 = vpack.c.b16 %v327, %v326
    %v412 = vpack.c.b16 %v329, %v328
    %v413 = vpack.c.b16 %v331, %v330
    %v414 = vpack.c.b16 %v333, %v332
    %v415 = vpack.c.b16 %v335, %v334
    %v416 = vpack.c.b16 %v337, %v336
    %v417 = vpack.c.b16 %v339, %v338
    %v418 = vpack.c.b16 %v341, %v340
    %v419 = vpack.c.b16 %v343, %v342
    %v420 = vpack.c.b16 %v345, %v344
    %v421 = vpack.c.b16 %v347, %v346
    %v422 = vpack.c.b16 %v349, %v348
    %v423 = vpack.c.b16 %v351, %v350
    %v424 = vpack.c.b16 %v353, %v352
    %v425 = vpack.c.b16 %v355, %v354
    %v426 = vpack.c.b16 %v357, %v356
    %v427 = vpack.c.b16 %v359, %v358
    %v428 = vpack.c.b16 %v361, %v360
    %v429 = vpack.c.b16 %v363, %v362
    %v430 = vpack.c.b16 %v365, %v364
    %v431 = vpack.c.b16 %v367, %v366
    %v432 = vpack.c.b16 %v369, %v368
    %v433 = vpack.c.b16 %v371, %v370
    %v434 = vpack.c.b16 %v373, %v372
    %v435 = vpack.c.b16 %v375, %v374
    %v436 = vpack.c.b16 %v377, %v376
    %v437 = vpack.c.b16 %v379, %v378
    %v438 = vpack.c.b16 %v381, %v380
    %v439 = vpack.c.b16 %v383, %v382
    %v440 = vpack.c.b16 %v385, %v384
    %v441 = vpack.c.b16 %v387, %v386
    %v442 = vpack.c.b16 %v389, %v388
    %v443 = vpack.c.b16 %v391, %v390
    %v444 = vpack.c.b16 %v393, %v392
    %v445 = vpack.c.b16 %v395, %v394
    %v446 = vpack.c.b16 %v397, %v396
    %v447 = vpack.c.b16 %v399, %v398
    %496 = vmatprep.subr.bf16.mxu0 0
    %497 = vmatpush1.bf16.msra.mxu0 %v400
    %498 = vmatprep.subr.bf16.mxu0 0
    %499 = vmatpush1.bf16.msra.mxu0 %v401
    %500 = vmatprep.subr.bf16.mxu0 0
    %501 = vmatpush1.bf16.msra.mxu0 %v402
    %502 = vmatprep.subr.bf16.mxu0 0
    %503 = vmatpush1.bf16.msra.mxu0 %v403
    %504 = vmatprep.subr.bf16.mxu0 0
    %505 = vmatpush1.bf16.msra.mxu0 %v404
    %506 = vmatprep.subr.bf16.mxu0 0
    %507 = vmatpush1.bf16.msra.mxu0 %v405
    %508 = vmatprep.subr.bf16.mxu0 0
    %509 = vmatpush1.bf16.msra.mxu0 %v406
    %510 = vmatprep.subr.bf16.mxu0 0
    %511 = vmatpush1.bf16.msra.mxu0 %v407
    %512 = vmatprep.subr.bf16.mxu0 0
    %513 = vmatpush1.bf16.msra.mxu0 %v408
    %514 = vmatprep.subr.bf16.mxu0 0
    %515 = vmatpush1.bf16.msra.mxu0 %v409
    %516 = vmatprep.subr.bf16.mxu0 0
    %517 = vmatpush1.bf16.msra.mxu0 %v410
    %518 = vmatprep.subr.bf16.mxu0 0
    %519 = vmatpush1.bf16.msra.mxu0 %v411
    %520 = vmatprep.subr.bf16.mxu0 0
    %521 = vmatpush1.bf16.msra.mxu0 %v412
    %522 = vmatprep.subr.bf16.mxu0 0
    %523 = vmatpush1.bf16.msra.mxu0 %v413
    %524 = vmatprep.subr.bf16.mxu0 0
    %525 = vmatpush1.bf16.msra.mxu0 %v414
    %526 = vmatprep.subr.bf16.mxu0 0
    %527 = vmatpush1.bf16.msra.mxu0 %v415
    %528 = vmatprep.mubr.bf16.mxu0 %v197
    %529 = vmatmul.mubr.bf16.gmra.mrb[0].mxu0 %v196
    %v530 = vpop.f32.mrb[0].mxu0
    %v531 = vadd.f32 %v185, %v530
    %v532 = vpop.f32.mrb[0].mxu0
    %v533 = vpop.f32.mrb[0].mxu0
    %v534 = vpop.f32.mrb[0].mxu0
    %535 = vdwg.mxu0
    %536 = vmatprep.subr.bf16.mxu0 0
    %537 = vmatpush1.bf16.msra.mxu0 %v416
    %538 = vmatprep.subr.bf16.mxu0 0
    %539 = vmatpush1.bf16.msra.mxu0 %v417
    %540 = vmatprep.subr.bf16.mxu0 0
    %541 = vmatpush1.bf16.msra.mxu0 %v418
    %542 = vmatprep.subr.bf16.mxu0 0
    %543 = vmatpush1.bf16.msra.mxu0 %v419
    %544 = vmatprep.subr.bf16.mxu0 0
    %545 = vmatpush1.bf16.msra.mxu0 %v420
    %546 = vmatprep.subr.bf16.mxu0 0
    %547 = vmatpush1.bf16.msra.mxu0 %v421
    %548 = vmatprep.subr.bf16.mxu0 0
    %549 = vmatpush1.bf16.msra.mxu0 %v422
    %550 = vmatprep.subr.bf16.mxu0 0
    %551 = vmatpush1.bf16.msra.mxu0 %v423
    %552 = vmatprep.subr.bf16.mxu0 0
    %553 = vmatpush1.bf16.msra.mxu0 %v424
    %554 = vmatprep.subr.bf16.mxu0 0
    %555 = vmatpush1.bf16.msra.mxu0 %v425
    %556 = vmatprep.subr.bf16.mxu0 0
    %557 = vmatpush1.bf16.msra.mxu0 %v426
    %558 = vmatprep.subr.bf16.mxu0 0
    %559 = vmatpush1.bf16.msra.mxu0 %v427
    %560 = vmatprep.subr.bf16.mxu0 0
    %561 = vmatpush1.bf16.msra.mxu0 %v428
    %562 = vmatprep.subr.bf16.mxu0 0
    %563 = vmatpush1.bf16.msra.mxu0 %v429
    %564 = vmatprep.subr.bf16.mxu0 0
    %565 = vmatpush1.bf16.msra.mxu0 %v430
    %566 = vmatprep.subr.bf16.mxu0 0
    %567 = vmatpush1.bf16.msra.mxu0 %v431
    %568 = vmatprep.mubr.bf16.mxu0 %v199
    %569 = vmatmul.mubr.bf16.gmra.mrb[0].mxu0 %v198
    %v570 = vpop.f32.mrb[0].mxu0
    %v571 = vadd.f32 %v531, %v570
    %v572 = vpop.f32.mrb[0].mxu0
    %v573 = vpop.f32.mrb[0].mxu0
    %v574 = vpop.f32.mrb[0].mxu0
    %575 = vdwg.mxu0
    %576 = vmatprep.subr.bf16.mxu0 0
    %577 = vmatpush1.bf16.msra.mxu0 %v432
    %578 = vmatprep.subr.bf16.mxu0 0
    %579 = vmatpush1.bf16.msra.mxu0 %v433
    %580 = vmatprep.subr.bf16.mxu0 0
    %581 = vmatpush1.bf16.msra.mxu0 %v434
    %582 = vmatprep.subr.bf16.mxu0 0
    %583 = vmatpush1.bf16.msra.mxu0 %v435
    %584 = vmatprep.subr.bf16.mxu0 0
    %585 = vmatpush1.bf16.msra.mxu0 %v436
    %586 = vmatprep.subr.bf16.mxu0 0
    %587 = vmatpush1.bf16.msra.mxu0 %v437
    %588 = vmatprep.subr.bf16.mxu0 0
    %589 = vmatpush1.bf16.msra.mxu0 %v438
    %590 = vmatprep.subr.bf16.mxu0 0
    %591 = vmatpush1.bf16.msra.mxu0 %v439
    %592 = vmatprep.subr.bf16.mxu0 0
    %593 = vmatpush1.bf16.msra.mxu0 %v440
    %594 = vmatprep.subr.bf16.mxu0 0
    %595 = vmatpush1.bf16.msra.mxu0 %v441
    %596 = vmatprep.subr.bf16.mxu0 0
    %597 = vmatpush1.bf16.msra.mxu0 %v442
    %598 = vmatprep.subr.bf16.mxu0 0
    %599 = vmatpush1.bf16.msra.mxu0 %v443
    %600 = vmatprep.subr.bf16.mxu0 0
    %601 = vmatpush1.bf16.msra.mxu0 %v444
    %602 = vmatprep.subr.bf16.mxu0 0
    %603 = vmatpush1.bf16.msra.mxu0 %v445
    %604 = vmatprep.subr.bf16.mxu0 0
    %605 = vmatpush1.bf16.msra.mxu0 %v446
    %606 = vmatprep.subr.bf16.mxu0 0
    %607 = vmatpush1.bf16.msra.mxu0 %v447
    %608 = vmatprep.mubr.bf16.mxu0 %v201
    %609 = vmatmul.mubr.bf16.gmra.mrb[0].mxu0 %v200
    %v610 = vpop.f32.mrb[0].mxu0
    %v611 = vadd.f32 %v571, %v610
    %v612 = vpop.f32.mrb[0].mxu0
    %v613 = vpop.f32.mrb[0].mxu0
    %v614 = vpop.f32.mrb[0].mxu0
    %615 = vdwg.mxu0
    %v616 = vpack.c.bf16 %v611, %v611
    %v617 = vld [vmem:[#allocation7] sm:$0xf]
    %v618 = vld [vmem:[#allocation7 + $0x4] sm:$0xf]
    %v619 = vld [vmem:[#allocation7 + $0x8] sm:$0xf]
    %v620 = vld [vmem:[#allocation7 + $0xc] sm:$0xf]
    %v621 = vld [vmem:[#allocation7 + $0x10] sm:$0xf]
    %v622 = vld [vmem:[#allocation7 + $0x14] sm:$0xf]
    %v623 = vld [vmem:[#allocation7 + $0x18] sm:$0xf]
    %v624 = vld [vmem:[#allocation7 + $0x1c] sm:$0xf]
    %v625 = vld [vmem:[#allocation7 + $0x20] sm:$0xf]
    %v626 = vld [vmem:[#allocation7 + $0x24] sm:$0xf]
    %v627 = vld [vmem:[#allocation7 + $0x28] sm:$0xf]
    %v628 = vld [vmem:[#allocation7 + $0x2c] sm:$0xf]
    %v629 = vld [vmem:[#allocation7 + $0x30] sm:$0xf]
    %v630 = vld [vmem:[#allocation7 + $0x34] sm:$0xf]
    %v631 = vld [vmem:[#allocation7 + $0x38] sm:$0xf]
    %v632 = vld [vmem:[#allocation7 + $0x3c] sm:$0xf]
    %v633 = vld [vmem:[%s4] sm:$0x1]
    %v635 = vlaneseq
    %v636 = vshrl.u32 %v635, 7
    %v637 = vsub.s32 0, %v636
    %v638 = vrot.slane %v633, %v637
    %v656 = vunpack.c.l.b16 %v617
    %v657 = vunpack.c.l.b16 %v618
    %v658 = vunpack.c.l.b16 %v619
    %v659 = vunpack.c.l.b16 %v620
    %v660 = vunpack.c.l.b16 %v621
    %v661 = vunpack.c.l.b16 %v622
    %v662 = vunpack.c.l.b16 %v623
    %v663 = vunpack.c.l.b16 %v624
    %v664 = vunpack.c.l.b16 %v625
    %v665 = vunpack.c.l.b16 %v626
    %v666 = vunpack.c.l.b16 %v627
    %v667 = vunpack.c.l.b16 %v628
    %v668 = vunpack.c.l.b16 %v629
    %v669 = vunpack.c.l.b16 %v630
    %v670 = vunpack.c.l.b16 %v631
    %v671 = vunpack.c.l.b16 %v632
    %v672 = vpack.c.b16 %v657, %v656
    %v673 = vpack.c.b16 %v659, %v658
    %v674 = vpack.c.b16 %v661, %v660
    %v675 = vpack.c.b16 %v663, %v662
    %v676 = vpack.c.b16 %v665, %v664
    %v677 = vpack.c.b16 %v667, %v666
    %v678 = vpack.c.b16 %v669, %v668
    %v679 = vpack.c.b16 %v671, %v670
    %688 = vmatprep.subr.bf16.mxu0 0
    %689 = vmatpush1.bf16.msra.mxu0 %v672
    %690 = vmatprep.subr.bf16.mxu0 0
    %691 = vmatpush1.bf16.msra.mxu0 %v673
    %692 = vmatprep.subr.bf16.mxu0 0
    %693 = vmatpush1.bf16.msra.mxu0 %v674
    %694 = vmatprep.subr.bf16.mxu0 0
    %695 = vmatpush1.bf16.msra.mxu0 %v675
    %696 = vmatprep.subr.bf16.mxu0 0
    %697 = vmatpush1.bf16.msra.mxu0 %v676
    %698 = vmatprep.subr.bf16.mxu0 0
    %699 = vmatpush1.bf16.msra.mxu0 %v677
    %700 = vmatprep.subr.bf16.mxu0 0
    %701 = vmatpush1.bf16.msra.mxu0 %v678
    %702 = vmatprep.subr.bf16.mxu0 0
    %703 = vmatpush1.bf16.msra.mxu0 %v679
    %704 = vmatprep.subr.bf16.mxu0 0
    %705 = vmatpush1.bf16.msra.mxu0 0
    %706 = vmatprep.subr.bf16.mxu0 0
    %707 = vmatpush1.bf16.msra.mxu0 0
    %708 = vmatprep.subr.bf16.mxu0 0
    %709 = vmatpush1.bf16.msra.mxu0 0
    %710 = vmatprep.subr.bf16.mxu0 0
    %711 = vmatpush1.bf16.msra.mxu0 0
    %712 = vmatprep.subr.bf16.mxu0 0
    %713 = vmatpush1.bf16.msra.mxu0 0
    %714 = vmatprep.subr.bf16.mxu0 0
    %715 = vmatpush1.bf16.msra.mxu0 0
    %716 = vmatprep.subr.bf16.mxu0 0
    %717 = vmatpush1.bf16.msra.mxu0 0
    %718 = vmatprep.subr.bf16.mxu0 0
    %719 = vmatpush1.bf16.msra.mxu0 0
    %720 = vmatprep.mubr.bf16.mxu0 0
    %721 = vmatmul.mubr.bf16.gmra.mrb[0].mxu0 %v616
    %v722 = vpop.f32.mrb[0].mxu0
    %v723 = vadd.f32 %v638, %v722
    %v724 = vpop.f32.mrb[0].mxu0
    %v725 = vpop.f32.mrb[0].mxu0
    %v726 = vpop.f32.mrb[0].mxu0
    %727 = vdwg.mxu0
    %v728 = vmax.f32 %v723, 0.0
    %v729 = vpack.c.bf16 %v728, %v728
    %v730 = vld [vmem:[#allocation8] sm:$0xf]
    %v731 = vld [vmem:[#allocation8 + $0x4] sm:$0xf]
    %v732 = vld [vmem:[#allocation8 + $0x8] sm:$0xf]
    %v733 = vld [vmem:[#allocation8 + $0xc] sm:$0xf]
    %v734 = vld [vmem:[#allocation8 + $0x10] sm:$0xf]
    %v735 = vld [vmem:[#allocation8 + $0x14] sm:$0xf]
    %v736 = vld [vmem:[#allocation8 + $0x18] sm:$0xf]
    %v737 = vld [vmem:[#allocation8 + $0x1c] sm:$0xf]
    %v738 = vld [vmem:[#allocation8 + $0x20] sm:$0xf]
    %v739 = vld [vmem:[#allocation8 + $0x24] sm:$0xf]
    %v740 = vld [vmem:[#allocation8 + $0x28] sm:$0xf]
    %v741 = vld [vmem:[#allocation8 + $0x2c] sm:$0xf]
    %v742 = vld [vmem:[#allocation8 + $0x30] sm:$0xf]
    %v743 = vld [vmem:[#allocation8 + $0x34] sm:$0xf]
    %v744 = vld [vmem:[#allocation8 + $0x38] sm:$0xf]
    %v745 = vld [vmem:[#allocation8 + $0x3c] sm:$0xf]
    %v746 = vld [vmem:[%s6] sm:$0x1]
    %v748 = vlaneseq
    %v749 = vshrl.u32 %v748, 7
    %v750 = vsub.s32 0, %v749
    %v751 = vrot.slane %v746, %v750
    %v769 = vunpack.c.l.b16 %v730
    %v770 = vunpack.c.l.b16 %v731
    %v771 = vunpack.c.l.b16 %v732
    %v772 = vunpack.c.l.b16 %v733
    %v773 = vunpack.c.l.b16 %v734
    %v774 = vunpack.c.l.b16 %v735
    %v775 = vunpack.c.l.b16 %v736
    %v776 = vunpack.c.l.b16 %v737
    %v777 = vunpack.c.l.b16 %v738
    %v778 = vunpack.c.l.b16 %v739
    %v779 = vunpack.c.l.b16 %v740
    %v780 = vunpack.c.l.b16 %v741
    %v781 = vunpack.c.l.b16 %v742
    %v782 = vunpack.c.l.b16 %v743
    %v783 = vunpack.c.l.b16 %v744
    %v784 = vunpack.c.l.b16 %v745
    %v785 = vpack.c.b16 %v770, %v769
    %v786 = vpack.c.b16 %v772, %v771
    %v787 = vpack.c.b16 %v774, %v773
    %v788 = vpack.c.b16 %v776, %v775
    %v789 = vpack.c.b16 %v778, %v777
    %v790 = vpack.c.b16 %v780, %v779
    %v791 = vpack.c.b16 %v782, %v781
    %v792 = vpack.c.b16 %v784, %v783
    %801 = vmatprep.subr.bf16.mxu0 0
    %802 = vmatpush1.bf16.msra.mxu0 %v785
    %803 = vmatprep.subr.bf16.mxu0 0
    %804 = vmatpush1.bf16.msra.mxu0 %v786
    %805 = vmatprep.subr.bf16.mxu0 0
    %806 = vmatpush1.bf16.msra.mxu0 %v787
    %807 = vmatprep.subr.bf16.mxu0 0
    %808 = vmatpush1.bf16.msra.mxu0 %v788
    %809 = vmatprep.subr.bf16.mxu0 0
    %810 = vmatpush1.bf16.msra.mxu0 %v789
    %811 = vmatprep.subr.bf16.mxu0 0
    %812 = vmatpush1.bf16.msra.mxu0 %v790
    %813 = vmatprep.subr.bf16.mxu0 0
    %814 = vmatpush1.bf16.msra.mxu0 %v791
    %815 = vmatprep.subr.bf16.mxu0 0
    %816 = vmatpush1.bf16.msra.mxu0 %v792
    %817 = vmatprep.subr.bf16.mxu0 0
    %818 = vmatpush1.bf16.msra.mxu0 0
    %819 = vmatprep.subr.bf16.mxu0 0
    %820 = vmatpush1.bf16.msra.mxu0 0
    %821 = vmatprep.subr.bf16.mxu0 0
    %822 = vmatpush1.bf16.msra.mxu0 0
    %823 = vmatprep.subr.bf16.mxu0 0
    %824 = vmatpush1.bf16.msra.mxu0 0
    %825 = vmatprep.subr.bf16.mxu0 0
    %826 = vmatpush1.bf16.msra.mxu0 0
    %827 = vmatprep.subr.bf16.mxu0 0
    %828 = vmatpush1.bf16.msra.mxu0 0
    %829 = vmatprep.subr.bf16.mxu0 0
    %830 = vmatpush1.bf16.msra.mxu0 0
    %831 = vmatprep.subr.bf16.mxu0 0
    %832 = vmatpush1.bf16.msra.mxu0 0
    %833 = vmatprep.mubr.bf16.mxu0 0
    %834 = vmatmul.mubr.bf16.gmra.mrb[0].mxu0 %v729
    %v835 = vpop.f32.mrb[0].mxu0
    %v836 = vadd.f32 %v751, %v835
    %v837 = vpop.f32.mrb[0].mxu0
    %v838 = vpop.f32.mrb[0].mxu0
    %v839 = vpop.f32.mrb[0].mxu0
    %840 = vdwg.mxu0
    %841 = vst [vmem:[#allocation10] sm:$0xff] %v836
    // Predicated region
    $region46: #{tpu_custom_call.1} parent=1 // pred_check
      _
    $region47: #{tpu_custom_call.1} parent=1 // pred_check_branch
      %843 = sbr.rel (0) target = $region49
    $region48: #{tpu_custom_call.1} parent=1 // pred_region
      %s845 = ssub.s32 128, 128
      %846 = vsyncadd [#allocation4], %s845
      %s848 = sshll.u32 [#allocation10], 4
      %s849 = int_to_ptr.vmem [resolvable:$true] %s848
      %851 = dma.vmem_to_hbm [thread:$0]  %s849, 128, %s7, [#allocation4]
    $region49: #{tpu_custom_call.1} parent=1 // pred_fallthru
      _
    // Predicated region
    $region50: #{tpu_custom_call.1} parent=1 // pred_check
      _
    $region51: #{tpu_custom_call.1} parent=1 // pred_check_branch
      %853 = sbr.rel (0) target = $region53
    $region52: #{tpu_custom_call.1} parent=1 // pred_region
      %854 = dma.done [#allocation4], 128
    $region53: #{tpu_custom_call.1} parent=1 // pred_fallthru
      _
    %855 = vsyncpa [#allocation3], 1
    %856 = vsyncpa [#allocation6], 1
    %857 = vsyncpa [#allocation9], 1
    %858 = vsyncpa [#allocation4], 1

</llo_original>
